<compile_context>
chip_gen: v7x
topology: tpu7x:2x2x1
jax: 0.10.0
libtpu: 0.0.40
codegen_flags: <defaults>
</compile_context>

<pallas_src>
import functools
import math

import jax
import jax.numpy as jnp
from jax import lax
from jax.experimental import pallas as pl
from jax.experimental.pallas import tpu as pltpu

# Row DMAs per wave on the HBM-gather path.  Waves are double-buffered, so up
# to 2 * _WAVE row copies are outstanding (e.g. 64 x 16 KiB = 1 MiB in flight
# for d_model=4096 f32), enough to cover ~1 us HBM latency at TB/s bandwidth.
_WAVE = 32

# Conservative scoped-VMEM budget that fits the 32 MiB default limit on
# v5e / v6e / v7x without touching compiler params.
_VMEM_SOFT_BUDGET = 24 * 1024 * 1024


def _round_up(x, m):
    return (x + m - 1) // m * m


def _cdiv(a, b):
    return (a + b - 1) // b


def _vmem_gather_kernel(ids_ref, table_ref, out_ref, *, scale, tile):
    """Fast path: table resident in VMEM; dynamic row loads with fused scale.

    ids_ref   : (n_pad,) int32 in SMEM (scalar-prefetched token ids)
    table_ref : (V, d) VMEM block (constant index_map -> fetched once)
    out_ref   : (tile, d) VMEM output tile
    """
    base = pl.program_id(0) * tile

    def body(t, carry):
        row = ids_ref[base + t]
        # Exact gather + scale in the table dtype (matches torch semantics).
        out_ref[pl.ds(t, 1), :] = table_ref[pl.ds(row, 1), :] * scale
        return carry

    # unroll gives the scheduler visibility to interleave the scalar id reads,
    # the dynamic vector loads and the stores.
    lax.fori_loop(0, tile, body, 0, unroll=8)


def _hbm_gather_kernel(ids_ref, emb_hbm, out_ref, sem, *, scale, tile, wave,
                       n_valid):
    """Large-vocab path: per-row HBM DMAs issued in double-buffered waves.

    ids_ref : (n_pad,) int32 in SMEM (scalar-prefetched token ids)
    emb_hbm : (V, d) embedding table left in HBM (memory_space=pl.ANY)
    out_ref : (tile, d) VMEM output tile; row DMAs land here directly
    sem     : (2, wave) DMA semaphores (wave parity x row-within-wave)
    """
    base = pl.program_id(0) * tile
    # Static wave schedule: (start_row, rows_in_wave) pairs.
    waves = [(w0, min(wave, tile - w0)) for w0 in range(0, tile, wave)]
    n_waves = len(waves)

    def start_row(t, parity, j):
        # SMEM id read happens at descriptor-construction time, i.e. before any
        # wait of the previous wave (waves are issued ahead of the waits).
        row = ids_ref[base + t]

        @pl.when(base + t < n_valid)            # skip padded token slots
        def _():
            pltpu.make_async_copy(
                emb_hbm.at[pl.ds(row, 1), :],    # one (1, d) table row in HBM
                out_ref.at[pl.ds(t, 1), :],      # straight into the output tile
                sem.at[parity, j],
            ).start()

    def wait_row(t, parity, j):
        @pl.when(base + t < n_valid)             # mirrors the start's predicate
        def _():
            # Same shapes (and identical dst ref) as the matching .start();
            # only the semaphore + transfer size matter for the wait.
            pltpu.make_async_copy(
                emb_hbm.at[pl.ds(0, 1), :],
                out_ref.at[pl.ds(t, 1), :],
                sem.at[parity, j],
            ).wait()

    def issue_wave(wi):
        w0, wlen = waves[wi]
        for j in range(wlen):
            start_row(w0 + j, wi % 2, j)

    issue_wave(0)                                # prime the DMA queue
    for wi in range(n_waves):                    # static -> fully unrolled
        if wi + 1 < n_waves:
            issue_wave(wi + 1)                   # keep up to 2*wave copies in flight
        w0, wlen = waves[wi]
        for j in range(wlen):
            wait_row(w0 + j, wi % 2, j)
        # Fused sqrt(d_model) scale on the rows that just landed (>=8-row
        # groups -> full-sublane stores); overlaps with the next wave's DMAs
        # instead of a serial whole-tile epilogue pass.
        out_ref[pl.ds(w0, wlen), :] = out_ref[pl.ds(w0, wlen), :] * scale


def input_embeddings(x_ids, embedding_table, d_model, *, token_tile=256,
                     force_hbm_gather=False):
    """Pallas equivalent of `nn.Embedding(vocab, d_model)(x) * sqrt(d_model)`.

    x_ids           : (B, S) integer token ids.
    embedding_table : (vocab_size, d_model) float (nn.Embedding.weight).
    Returns (B, S, d_model) in the table's dtype.
    """
    b, s = x_ids.shape
    v, d = embedding_table.shape
    assert d == d_model

    n = b * s
    itemsize = jnp.dtype(embedding_table.dtype).itemsize

    # Token tile: big enough to amortize per-grid-step overhead, small enough
    # to give >=2 grid steps (both v7x TensorCores busy) and a multiple of 8.
    tile = min(token_tile, _round_up(_cdiv(n, 2), 8))
    # Keep the double-buffered output tile inside the scoped-VMEM budget
    # (matters for very large d_model, esp. on v7x's 64 MiB physical VMEM).
    while tile > 8 and 2 * tile * d * itemsize > _VMEM_SOFT_BUDGET:
        tile = _round_up(tile // 2, 8)
    n_pad = _round_up(n, tile)

    # Flatten, clamp and pad the ids (SMEM-resident via scalar prefetch).
    # TODO(synk): PyTorch nn.Embedding raises on out-of-range ids; here they
    # are clamped to [0, vocab-1] so the row gather can never fault.
    # TODO(synk): for very long sequences (>~100K tokens) the monolithic
    # scalar-prefetch id vector should become a per-tile SMEM-blocked input.
    ids = jnp.clip(x_ids.reshape(-1).astype(jnp.int32), 0, v - 1)
    if n_pad != n:
        ids = jnp.pad(ids, (0, n_pad - n))

    scale = math.sqrt(d_model)
    grid = (n_pad // tile,)
    out_shape = jax.ShapeDtypeStruct((n_pad, d), embedding_table.dtype)
    out_spec = pl.BlockSpec((tile, d), lambda i, ids_ref: (i, 0))

    table_bytes = v * d * itemsize
    out_tile_bytes = tile * d * itemsize
    # Fast path iff the table and the output tile (both double-buffered by the
    # pipeline) comfortably fit the default scoped-VMEM limit on all chips.
    use_vmem_table = (not force_hbm_gather) and (
        2 * table_bytes + 2 * out_tile_bytes <= _VMEM_SOFT_BUDGET)

    if use_vmem_table:
        out = pl.pallas_call(
            functools.partial(_vmem_gather_kernel, scale=scale, tile=tile),
            out_shape=out_shape,
            grid_spec=pltpu.PrefetchScalarGridSpec(
                num_scalar_prefetch=1,                     # ids -> SMEM
                grid=grid,
                in_specs=[
                    # Whole table resident in VMEM; constant block index so the
                    # pipeline fetches it exactly once.
                    pl.BlockSpec((v, d), lambda i, ids_ref: (0, 0)),
                ],
                out_specs=out_spec,
            ),
            compiler_params=pltpu.CompilerParams(
                dimension_semantics=("parallel",)),
        )(ids, embedding_table)
    else:
        wave = min(_WAVE, tile)
        compiler_kwargs = dict(dimension_semantics=("parallel",))
        if 2 * out_tile_bytes > _VMEM_SOFT_BUDGET:
            compiler_kwargs["vmem_limit_bytes"] = int(
                2 * out_tile_bytes + (8 << 20))
        out = pl.pallas_call(
            functools.partial(_hbm_gather_kernel, scale=scale, tile=tile,
                              wave=wave, n_valid=n),
            out_shape=out_shape,
            grid_spec=pltpu.PrefetchScalarGridSpec(
                num_scalar_prefetch=1,                     # ids -> SMEM
                grid=grid,
                in_specs=[
                    pl.BlockSpec(memory_space=pl.ANY),     # table stays in HBM
                ],
                out_specs=out_spec,
                scratch_shapes=[
                    pltpu.SemaphoreType.DMA((2, wave)),
                ],
            ),
            compiler_params=pltpu.CompilerParams(**compiler_kwargs),
        )(ids, embedding_table)

    return out[:n].reshape(b, s, d)


if __name__ == "__main__":
    # Small shapes consistent with the module: batch=2, seq=8, vocab=64, d_model=32.
    batch, seq, vocab_size, d_model = 2, 8, 64, 32

    key = jax.random.PRNGKey(0)
    k_ids, k_emb = jax.random.split(key)

    # Deterministic synthetic parameters (nn.Embedding weight ~ N(0, 1)).
    embedding_table = jax.random.normal(k_emb, (vocab_size, d_model),
                                        dtype=jnp.float32)
    x_ids = jax.random.randint(k_ids, (batch, seq), 0, vocab_size,
                               dtype=jnp.int32)

    # Pure-JAX reference.
    ref = jnp.take(embedding_table, x_ids, axis=0) * math.sqrt(d_model)

    # Fast path (VMEM-resident table) — what this table size actually selects.
    out_fast = jax.block_until_ready(
        input_embeddings(x_ids, embedding_table, d_model))
    assert out_fast.shape == (batch, seq, d_model)
    assert jnp.allclose(out_fast, ref, atol=1e-5, rtol=1e-5)

    # Also exercise the large-vocab HBM-gather path at these small shapes.
    out_hbm = jax.block_until_ready(
        input_embeddings(x_ids, embedding_table, d_model,
                         force_hbm_gather=True))
    assert jnp.allclose(out_hbm, ref, atol=1e-5, rtol=1e-5)

    print("KERNEL_OK")
</pallas_src>

<mosaic_0001>
module attributes {stable_mosaic.version = 11 : i64} {
  func.func @_vmem_gather_kernel(%arg0: i32, %arg1: memref<16xi32, #tpu.memory_space<smem>>, %arg2: memref<64x32xf32, #tpu.memory_space<vmem>>, %arg3: memref<8x32xf32, #tpu.memory_space<vmem>>) attributes {dimension_semantics = [#tpu.dimension_semantics<parallel>], iteration_bounds = array<i64: 2>, scalar_prefetch = 1 : i64, scratch_operands = 0 : i64, tpu.core_type = #tpu.core_type<tc>, window_params = [{pipeline_mode = #tpu.pipeline_mode<synchronous>, transform_indices = @transform_0, window_bounds = array<i64: 64, 32>}, {transform_indices = @transform_1, window_bounds = array<i64: 8, 32>}]} {
    %c8_i32 = arith.constant 8 : i32
    %0 = arith.muli %arg0, %c8_i32 : i32
    %c0_i32 = arith.constant 0 : i32
    %1 = arith.addi %0, %c0_i32 : i32
    %2 = arith.index_cast %1 : i32 to index
    %3 = memref.load %arg1[%2] : memref<16xi32, #tpu.memory_space<smem>>
    %4 = arith.index_cast %3 : i32 to index
    %c0 = arith.constant 0 : index
    %5 = vector.load %arg2[%4, %c0] : memref<64x32xf32, #tpu.memory_space<vmem>>, vector<1x32xf32>
    %cst = arith.constant 5.65685415 : f32
    %6 = vector.broadcast %cst : f32 to vector<1x32xf32>
    %7 = arith.mulf %5, %6 : vector<1x32xf32>
    %8 = arith.index_cast %c0_i32 : i32 to index
    %c0_0 = arith.constant 0 : index
    %9 = vector.load %arg3[%8, %c0_0] : memref<8x32xf32, #tpu.memory_space<vmem>>, vector<1x32xf32>
    tpu.vector_store %arg3[%8, %c0_0], %7 {strides = array<i32>} : memref<8x32xf32, #tpu.memory_space<vmem>>, vector<1x32xf32>,
    %c1_i32 = arith.constant 1 : i32
    %10 = arith.addi %0, %c1_i32 : i32
    %11 = arith.index_cast %10 : i32 to index
    %12 = memref.load %arg1[%11] : memref<16xi32, #tpu.memory_space<smem>>
    %13 = arith.index_cast %12 : i32 to index
    %c0_1 = arith.constant 0 : index
    %14 = vector.load %arg2[%13, %c0_1] : memref<64x32xf32, #tpu.memory_space<vmem>>, vector<1x32xf32>
    %cst_2 = arith.constant 5.65685415 : f32
    %15 = vector.broadcast %cst_2 : f32 to vector<1x32xf32>
    %16 = arith.mulf %14, %15 : vector<1x32xf32>
    %17 = arith.index_cast %c1_i32 : i32 to index
    %c0_3 = arith.constant 0 : index
    %18 = vector.load %arg3[%17, %c0_3] : memref<8x32xf32, #tpu.memory_space<vmem>>, vector<1x32xf32>
    tpu.vector_store %arg3[%17, %c0_3], %16 {strides = array<i32>} : memref<8x32xf32, #tpu.memory_space<vmem>>, vector<1x32xf32>,
    %c2_i32 = arith.constant 2 : i32
    %19 = arith.addi %0, %c2_i32 : i32
    %20 = arith.index_cast %19 : i32 to index
    %21 = memref.load %arg1[%20] : memref<16xi32, #tpu.memory_space<smem>>
    %22 = arith.index_cast %21 : i32 to index
    %c0_4 = arith.constant 0 : index
    %23 = vector.load %arg2[%22, %c0_4] : memref<64x32xf32, #tpu.memory_space<vmem>>, vector<1x32xf32>
    %cst_5 = arith.constant 5.65685415 : f32
    %24 = vector.broadcast %cst_5 : f32 to vector<1x32xf32>
    %25 = arith.mulf %23, %24 : vector<1x32xf32>
    %26 = arith.index_cast %c2_i32 : i32 to index
    %c0_6 = arith.constant 0 : index
    %27 = vector.load %arg3[%26, %c0_6] : memref<8x32xf32, #tpu.memory_space<vmem>>, vector<1x32xf32>
    tpu.vector_store %arg3[%26, %c0_6], %25 {strides = array<i32>} : memref<8x32xf32, #tpu.memory_space<vmem>>, vector<1x32xf32>,
    %c3_i32 = arith.constant 3 : i32
    %28 = arith.addi %0, %c3_i32 : i32
    %29 = arith.index_cast %28 : i32 to index
    %30 = memref.load %arg1[%29] : memref<16xi32, #tpu.memory_space<smem>>
    %31 = arith.index_cast %30 : i32 to index
    %c0_7 = arith.constant 0 : index
    %32 = vector.load %arg2[%31, %c0_7] : memref<64x32xf32, #tpu.memory_space<vmem>>, vector<1x32xf32>
    %cst_8 = arith.constant 5.65685415 : f32
    %33 = vector.broadcast %cst_8 : f32 to vector<1x32xf32>
    %34 = arith.mulf %32, %33 : vector<1x32xf32>
    %35 = arith.index_cast %c3_i32 : i32 to index
    %c0_9 = arith.constant 0 : index
    %36 = vector.load %arg3[%35, %c0_9] : memref<8x32xf32, #tpu.memory_space<vmem>>, vector<1x32xf32>
    tpu.vector_store %arg3[%35, %c0_9], %34 {strides = array<i32>} : memref<8x32xf32, #tpu.memory_space<vmem>>, vector<1x32xf32>,
    %c4_i32 = arith.constant 4 : i32
    %37 = arith.addi %0, %c4_i32 : i32
    %38 = arith.index_cast %37 : i32 to index
    %39 = memref.load %arg1[%38] : memref<16xi32, #tpu.memory_space<smem>>
    %40 = arith.index_cast %39 : i32 to index
    %c0_10 = arith.constant 0 : index
    %41 = vector.load %arg2[%40, %c0_10] : memref<64x32xf32, #tpu.memory_space<vmem>>, vector<1x32xf32>
    %cst_11 = arith.constant 5.65685415 : f32
    %42 = vector.broadcast %cst_11 : f32 to vector<1x32xf32>
    %43 = arith.mulf %41, %42 : vector<1x32xf32>
    %44 = arith.index_cast %c4_i32 : i32 to index
    %c0_12 = arith.constant 0 : index
    %45 = vector.load %arg3[%44, %c0_12] : memref<8x32xf32, #tpu.memory_space<vmem>>, vector<1x32xf32>
    tpu.vector_store %arg3[%44, %c0_12], %43 {strides = array<i32>} : memref<8x32xf32, #tpu.memory_space<vmem>>, vector<1x32xf32>,
    %c5_i32 = arith.constant 5 : i32
    %46 = arith.addi %0, %c5_i32 : i32
    %47 = arith.index_cast %46 : i32 to index
    %48 = memref.load %arg1[%47] : memref<16xi32, #tpu.memory_space<smem>>
    %49 = arith.index_cast %48 : i32 to index
    %c0_13 = arith.constant 0 : index
    %50 = vector.load %arg2[%49, %c0_13] : memref<64x32xf32, #tpu.memory_space<vmem>>, vector<1x32xf32>
    %cst_14 = arith.constant 5.65685415 : f32
    %51 = vector.broadcast %cst_14 : f32 to vector<1x32xf32>
    %52 = arith.mulf %50, %51 : vector<1x32xf32>
    %53 = arith.index_cast %c5_i32 : i32 to index
    %c0_15 = arith.constant 0 : index
    %54 = vector.load %arg3[%53, %c0_15] : memref<8x32xf32, #tpu.memory_space<vmem>>, vector<1x32xf32>
    tpu.vector_store %arg3[%53, %c0_15], %52 {strides = array<i32>} : memref<8x32xf32, #tpu.memory_space<vmem>>, vector<1x32xf32>,
    %c6_i32 = arith.constant 6 : i32
    %55 = arith.addi %0, %c6_i32 : i32
    %56 = arith.index_cast %55 : i32 to index
    %57 = memref.load %arg1[%56] : memref<16xi32, #tpu.memory_space<smem>>
    %58 = arith.index_cast %57 : i32 to index
    %c0_16 = arith.constant 0 : index
    %59 = vector.load %arg2[%58, %c0_16] : memref<64x32xf32, #tpu.memory_space<vmem>>, vector<1x32xf32>
    %cst_17 = arith.constant 5.65685415 : f32
    %60 = vector.broadcast %cst_17 : f32 to vector<1x32xf32>
    %61 = arith.mulf %59, %60 : vector<1x32xf32>
    %62 = arith.index_cast %c6_i32 : i32 to index
    %c0_18 = arith.constant 0 : index
    %63 = vector.load %arg3[%62, %c0_18] : memref<8x32xf32, #tpu.memory_space<vmem>>, vector<1x32xf32>
    tpu.vector_store %arg3[%62, %c0_18], %61 {strides = array<i32>} : memref<8x32xf32, #tpu.memory_space<vmem>>, vector<1x32xf32>,
    %c7_i32 = arith.constant 7 : i32
    %64 = arith.addi %0, %c7_i32 : i32
    %65 = arith.index_cast %64 : i32 to index
    %66 = memref.load %arg1[%65] : memref<16xi32, #tpu.memory_space<smem>>
    %67 = arith.index_cast %66 : i32 to index
    %c0_19 = arith.constant 0 : index
    %68 = vector.load %arg2[%67, %c0_19] : memref<64x32xf32, #tpu.memory_space<vmem>>, vector<1x32xf32>
    %cst_20 = arith.constant 5.65685415 : f32
    %69 = vector.broadcast %cst_20 : f32 to vector<1x32xf32>
    %70 = arith.mulf %68, %69 : vector<1x32xf32>
    %71 = arith.index_cast %c7_i32 : i32 to index
    %c0_21 = arith.constant 0 : index
    %72 = vector.load %arg3[%71, %c0_21] : memref<8x32xf32, #tpu.memory_space<vmem>>, vector<1x32xf32>
    tpu.vector_store %arg3[%71, %c0_21], %70 {strides = array<i32>} : memref<8x32xf32, #tpu.memory_space<vmem>>, vector<1x32xf32>,
    %c8_i32_22 = arith.constant 8 : i32
    return
  }
  func.func @transform_0(%arg0: i32, %arg1: memref<16xi32, #tpu.memory_space<smem>>) -> (i32, i32) {
    %c0_i32 = arith.constant 0 : i32
    %c0_i32_0 = arith.constant 0 : i32
    %c0_i32_1 = arith.constant 0 : i32
    return %c0_i32, %c0_i32_0 : i32, i32
  }
  func.func @transform_1(%arg0: i32, %arg1: memref<16xi32, #tpu.memory_space<smem>>) -> (i32, i32) {
    %c0_i32 = arith.constant 0 : i32
    %c0_i32_0 = arith.constant 0 : i32
    return %arg0, %c0_i32 : i32, i32
  }
}

</mosaic_0001>

<llo_original>
// kernel: tpu_custom_call.1
$region0: #{tpu_custom_call.1}
  #allocation0 [shape = 'u32[]', space=smem, size = 0x4, offset = 0x4, fixed_abs, tag = 'smem constant byte address 0x4 - core index']
  #allocation1 [shape = 'u32[144,128]{1,0:T(1,128)}', space=vmem, size = 0x12000, scoped, tag = 'internal scratch']
  #allocation2 [shape = 's32[1]{0}', space=sflag, size = 0x4, scoped, tag = 'scoped memory for tpu_custom_call.1']
  #allocation3 [shape = 'u8[512]{0}', space=smem, size = 0x200, scoped, tag = 'prefetched SMEM operand 0']
  %s0 = inlined_call_operand.vmem [shape: s32[16], index: 0, kind: input, shape index: {}]
  %s1 = inlined_call_operand.vmem [shape: f32[64,32], index: 1, kind: input, shape index: {}]
  %s2 = inlined_call_operand.hbm [shape: f32[16,32], index: 2, kind: output, shape index: {}]
  %s3 = sld [smem:[#allocation0]]
  $region37: #{tpu_custom_call.1} parent=0
    _
  %s5 = ssub.s32 1, %s3
  %s6 = scalar_select 0, %s5, %s3
  %s7 = sshll.u32 %s0, 4
  %s8 = int_to_ptr.vmem [resolvable:$true] %s7
  %10 = dma.vmem_to_smem %s8, 16, [#allocation3], [#allocation2]
  %11 = dma.done [#allocation2], 16
  %12 = sfence
  $region1: #{tpu_custom_call.1} parent=0
    #allocation4 [shape = 'u8[8192]{0}', space=vmem, size = 0x2000, scoped, tag = 'output window, operand 0']
    #allocation5 [shape = 's32[2]{0}', space=sflag, size = 0x8, scoped, tag = 'scoped memory for tpu_custom_call.1']
    %13 = vsyncpa [#allocation5], 0
    %s14 = scalar_lea.sflag [#allocation5], 1
    %15 = vsyncpa %s14, 0
    loop: start=0, step=1, limit=4
    $region2: #{tpu_custom_call.1} parent=1 // loop_pre_header
      _
    $region3: #{tpu_custom_call.1} parent=1 // loop_header
      %s17 = sphi 0, %s21
      %p18 = scmp.ge.s32.totalorder %s17, 4
      %s25 = sphi 0, %s25
      %s27 = sphi 0, %s25
      %s28 = sphi 0, %s27
      %s42 = sphi 0, %s28
      %s48 = sphi 0, %s50
      %s51 = sphi 0, %s48
      %s52 = sphi 0, %s51
      %s68 = sphi 0, %s52
    $region4: #{tpu_custom_call.1} parent=1 // loop_header_branch
      %20 = sbr.rel (%p18) target = $region8
    $region5: #{tpu_custom_call.1} parent=1 // loop_body
      %s22 = ssub.s32 %s17, 1
      %s23 = ssub.s32 %s17, 2
      %s24 = sadd.s32 %s17, 1
      %s26 = sadd.s32 %s25, 1
      %p29 = scmp.eq.s32.totalorder %s17, 1
      %p30 = scmp.ne.s32.totalorder %s25, %s27
      %p31 = scmp.eq.s32.totalorder %s17, 0
      %p32 = por %p30, %p31
      %p33 = scmp.ne.s32.totalorder %s25, %s27
      %p34 = scmp.eq.s32.totalorder %s22, 1
      %p35 = por %p33, %p34
      %p36 = scmp.ne.s32.totalorder %s27, %s28
      %p37 = scmp.eq.s32.totalorder %s22, 0
      %p38 = por %p36, %p37
      %p39 = scmp.ne.s32.totalorder %s27, %s28
      %p40 = scmp.eq.s32.totalorder %s23, 1
      %p41 = por %p39, %p40
      %p43 = scmp.ne.s32.totalorder %s28, %s42
      %p44 = scmp.eq.s32.totalorder %s23, 0
      %p45 = por %p43, %p44
      %s46 = ssub.s32 %s17, %s24
      %p47 = scmp.eq.s32.totalorder %s46, 0
      %s49 = sadd.s32 %s48, 1
      %s50 = scalar_select %p47, %s48, %s49
      %p53 = pneg %p47
      %p54 = scmp.eq.s32.totalorder %s17, 1
      %p55 = por %p53, %p54
      %p56 = scmp.ne.s32.totalorder %s48, %s51
      %p57 = scmp.eq.s32.totalorder %s17, 0
      %p58 = por %p56, %p57
      %p59 = scmp.ne.s32.totalorder %s48, %s51
      %p60 = scmp.eq.s32.totalorder %s22, 1
      %p61 = por %p59, %p60
      %p62 = scmp.ne.s32.totalorder %s51, %s52
      %p63 = scmp.eq.s32.totalorder %s22, 0
      %p64 = por %p62, %p63
      %p65 = scmp.ne.s32.totalorder %s51, %s52
      %p66 = scmp.eq.s32.totalorder %s23, 1
      %p67 = por %p65, %p66
      %p69 = scmp.ne.s32.totalorder %s52, %s68
      %p70 = scmp.eq.s32.totalorder %s23, 0
      %p71 = por %p69, %p70
      %p72 = scmp.le.s32.totalorder 1, %s17
      %p73 = scmp.lt.s32.totalorder %s17, 3
      %p74 = pnand %p72, %p73
      %p75 = pneg %p74
      // Predicated region
      $region9: #{tpu_custom_call.1} parent=5 // pred_check
        _
      $region10: #{tpu_custom_call.1} parent=5 // pred_check_branch
        %77 = sbr.rel (%p74) target = $region12
      $region11: #{tpu_custom_call.1} parent=5 // pred_region
        %s78 = ssub.s32 %s17, 1
        // Predicated region
        $region13: #{tpu_custom_call.1} parent=11 // pred_check
          %p79 = pneg %p38
        $region14: #{tpu_custom_call.1} parent=11 // pred_check_branch
          %81 = sbr.rel (%p79) target = $region16
        $region15: #{tpu_custom_call.1} parent=11 // pred_region
          _
        $region16: #{tpu_custom_call.1} parent=11 // pred_fallthru
          _
      $region12: #{tpu_custom_call.1} parent=5 // pred_fallthru
        _
      %p82 = scmp.lt.s32.totalorder %s17, 2
      // Predicated region
      $region17: #{tpu_custom_call.1} parent=5 // pred_check
        %p83 = pneg %p82
      $region18: #{tpu_custom_call.1} parent=5 // pred_check_branch
        %85 = sbr.rel (%p83) target = $region20
      $region19: #{tpu_custom_call.1} parent=5 // pred_region
        _
      $region20: #{tpu_custom_call.1} parent=5 // pred_fallthru
        _
      %p86 = scmp.le.s32.totalorder 1, %s17
      %p87 = scmp.lt.s32.totalorder %s17, 3
      %p88 = pnand %p86, %p87
      %p89 = pneg %p88
      // Predicated region
      $region21: #{tpu_custom_call.1} parent=5 // pred_check
        _
      $region22: #{tpu_custom_call.1} parent=5 // pred_check_branch
        %91 = sbr.rel (%p88) target = $region24
      $region23: #{tpu_custom_call.1} parent=5 // pred_region
        %s92 = ssub.s32 %s17, 1
        %p93 = pneg %p38
        %p94 = pneg %p35
        %p95 = pneg %p64
        %p96 = pneg %p61
        %s97 = sand.u32 %s51, 1
        %s98 = scalar_lea.sflag [#allocation5], %s97
        %s99 = sand.u32 %s51, 1
        %s100 = smul.addr %s99, 8
        %s101 = scalar_lea.vmem [#allocation4], %s100
        %s102 = smul.u32 %s22, 8
        %s103 = sld [smem:[#allocation3 + %s102]]
        %s104 = scalar_lea.vmem %s1, %s103
        %v105 = vld [vmem:[%s104] sm:$0x1]
        %v106 = vmul.f32 %v105, 5.656854
        %vm107 = vcmask 253952
        %108 = vst.msk [vmem:[%s101] sm:$0x1] %vm107, %v106
        %s109 = sadd.s32 %s102, 1
        %s110 = sld [smem:[#allocation3 + %s109]]
        %s111 = scalar_lea.vmem %s1, %s110
        %v112 = vld [vmem:[%s111] sm:$0x1]
        %v113 = vmul.f32 %v112, 5.656854
        %114 = vst.msk [vmem:[%s101 + $0x1] sm:$0x1] %vm107, %v113
        %s115 = sadd.s32 %s102, 2
        %s116 = sld [smem:[#allocation3 + %s115]]
        %s117 = scalar_lea.vmem %s1, %s116
        %v118 = vld [vmem:[%s117] sm:$0x1]
        %v119 = vmul.f32 %v118, 5.656854
        %120 = vst.msk [vmem:[%s101 + $0x2] sm:$0x1] %vm107, %v119
        %s121 = sadd.s32 %s102, 3
        %s122 = sld [smem:[#allocation3 + %s121]]
        %s123 = scalar_lea.vmem %s1, %s122
        %v124 = vld [vmem:[%s123] sm:$0x1]
        %v125 = vmul.f32 %v124, 5.656854
        %126 = vst.msk [vmem:[%s101 + $0x3] sm:$0x1] %vm107, %v125
        %s127 = sadd.s32 %s102, 4
        %s128 = sld [smem:[#allocation3 + %s127]]
        %s129 = scalar_lea.vmem %s1, %s128
        %v130 = vld [vmem:[%s129] sm:$0x1]
        %v131 = vmul.f32 %v130, 5.656854
        %132 = vst.msk [vmem:[%s101 + $0x4] sm:$0x1] %vm107, %v131
        %s133 = sadd.s32 %s102, 5
        %s134 = sld [smem:[#allocation3 + %s133]]
        %s135 = scalar_lea.vmem %s1, %s134
        %v136 = vld [vmem:[%s135] sm:$0x1]
        %v137 = vmul.f32 %v136, 5.656854
        %138 = vst.msk [vmem:[%s101 + $0x5] sm:$0x1] %vm107, %v137
        %s139 = sadd.s32 %s102, 6
        %s140 = sld [smem:[#allocation3 + %s139]]
        %s141 = scalar_lea.vmem %s1, %s140
        %v142 = vld [vmem:[%s141] sm:$0x1]
        %v143 = vmul.f32 %v142, 5.656854
        %144 = vst.msk [vmem:[%s101 + $0x6] sm:$0x1] %vm107, %v143
        %s145 = sadd.s32 %s102, 7
        %s146 = sld [smem:[#allocation3 + %s145]]
        %s147 = scalar_lea.vmem %s1, %s146
        %v148 = vld [vmem:[%s147] sm:$0x1]
        %v149 = vmul.f32 %v148, 5.656854
        %150 = vst.msk [vmem:[%s101 + $0x7] sm:$0x1] %vm107, %v149
        %s151 = sand.u32 %s51, 1
        %s152 = scalar_lea.sflag [#allocation5], %s151
        %s153 = sand.u32 %s51, 1
        %s154 = smul.addr %s153, 8
        %s155 = scalar_lea.vmem [#allocation4], %s154
        // Predicated region
        $region25: #{tpu_custom_call.1} parent=23 // pred_check
          %p156 = pneg %p61
        $region26: #{tpu_custom_call.1} parent=23 // pred_check_branch
          %158 = sbr.rel (%p156) target = $region28
        $region27: #{tpu_custom_call.1} parent=23 // pred_region
          %s160 = ssub.s32 128, 128
          %161 = vsyncadd %s152, %s160
          %s162 = smul.addr %s22, 128
          %s163 = scalar_lea.hbm %s2, %s162
          %s165 = sshll.u32 %s155, 4
          %s166 = int_to_ptr.vmem [resolvable:$true] %s165
          %168 = dma.vmem_to_hbm [thread:$0]  %s166, 128, %s163, %s152
        $region28: #{tpu_custom_call.1} parent=23 // pred_fallthru
          _
      $region24: #{tpu_custom_call.1} parent=5 // pred_fallthru
        _
      %p169 = scmp.le.s32.totalorder 2, %s17
      // Predicated region
      $region29: #{tpu_custom_call.1} parent=5 // pred_check
        %p170 = pneg %p169
      $region30: #{tpu_custom_call.1} parent=5 // pred_check_branch
        %172 = sbr.rel (%p170) target = $region32
      $region31: #{tpu_custom_call.1} parent=5 // pred_region
        %s173 = ssub.s32 %s17, 2
        // Predicated region
        $region33: #{tpu_custom_call.1} parent=31 // pred_check
          %p174 = pneg %p67
        $region34: #{tpu_custom_call.1} parent=31 // pred_check_branch
          %176 = sbr.rel (%p174) target = $region36
        $region35: #{tpu_custom_call.1} parent=31 // pred_region
          %s177 = sand.u32 %s52, 1
          %s178 = scalar_lea.sflag [#allocation5], %s177
          %s179 = sand.u32 %s52, 1
          %s180 = smul.addr %s179, 8
          %s181 = scalar_lea.vmem [#allocation4], %s180
          %182 = dma.done %s178, 128
        $region36: #{tpu_custom_call.1} parent=31 // pred_fallthru
          _
      $region32: #{tpu_custom_call.1} parent=5 // pred_fallthru
        _
    $region6: #{tpu_custom_call.1} parent=1 // loop_footer
      %s21 = sadd.s32 1, %s17
    $region7: #{tpu_custom_call.1} parent=1 // loop_footer_branch
      %16 = sbr.rel target = $region3
    $region8: #{tpu_custom_call.1} parent=1 // loop_exit
      _
    %183 = vsyncpa [#allocation5], 1
    %s184 = scalar_lea.sflag [#allocation5], 1
    %185 = vsyncpa %s184, 1

</llo_original>
